<compile_context>
chip_gen: v5e
topology: v5e:2x2
jax: 0.10.0
libtpu: 0.0.40
codegen_flags: <defaults>
</compile_context>

<pallas_src>
import functools
import itertools

import jax
import jax.numpy as jnp
import numpy as np
from jax.experimental import pallas as pl
from jax.experimental.pallas import tpu as pltpu

LANE = 128


def _round_up(x, m):
    return (x + m - 1) // m * m


def _cost_kernel(logits_ref, obox_ref, onehot_ref, tbox_ref, c_ref, *, w_bbox, w_giou):
    logits = logits_ref[...]          # (TN, C_pad)  f32, padded cols = -1e30
    ob = obox_ref[...]                # (TN, 8)      [cx, cy, w, h, x0, y0, x1, y1]
    oh = onehot_ref[...]              # (C_pad, M_pad) one-hot pre-scaled by -w_class
    tb = tbox_ref[...]                # (8, M_pad)   rows: [cx, cy, w, h, x0, y0, x1, y1]

    # ---- class cost: -w_class * softmax(logits)[:, tgt_ids] ----
    # Numerator matmul on the MXU; normalization folded into an (TN, M_pad) recip-multiply.
    m = jnp.max(logits, axis=-1, keepdims=True)
    e = jnp.exp(logits - m)                                            # padded cols -> 0
    inv_rowsum = pl.reciprocal(jnp.sum(e, axis=-1, keepdims=True))     # (TN, 1), exact
    cost_class = jnp.dot(e, oh, preferred_element_type=jnp.float32) * inv_rowsum  # (TN, M_pad)

    # ---- L1 box cost (cxcywh), torch.cdist(p=1) equivalent ----
    l1 = jnp.abs(ob[:, 0:1] - tb[0:1, :])
    for k in range(1, 4):
        l1 = l1 + jnp.abs(ob[:, k:k + 1] - tb[k:k + 1, :])

    # ---- GIoU cost on precomputed xyxy corners ----
    o_x0, o_y0, o_x1, o_y1 = ob[:, 4:5], ob[:, 5:6], ob[:, 6:7], ob[:, 7:8]   # (TN, 1)
    t_x0, t_y0, t_x1, t_y1 = tb[4:5, :], tb[5:6, :], tb[6:7, :], tb[7:8, :]   # (1, M_pad)
    area1 = ob[:, 2:3] * ob[:, 3:4]   # w*h  (TN, 1)
    area2 = tb[2:3, :] * tb[3:4, :]   # (1, M_pad)

    inter = (jnp.maximum(jnp.minimum(o_x1, t_x1) - jnp.maximum(o_x0, t_x0), 0.0)
             * jnp.maximum(jnp.minimum(o_y1, t_y1) - jnp.maximum(o_y0, t_y0), 0.0))
    union = area1 + area2 - inter
    # Enclosing-box extent is >= 0 by construction -> no clamp needed.
    enc = ((jnp.maximum(o_x1, t_x1) - jnp.minimum(o_x0, t_x0))
           * (jnp.maximum(o_y1, t_y1) - jnp.minimum(o_y0, t_y0)))
    # cost_giou = -(iou - (enc - union)/enc) = (enc - union)/enc - inter/union
    cost_giou = (enc - union) * pl.reciprocal(enc) - inter * pl.reciprocal(union)

    c_ref[...] = cost_class + w_bbox * l1 + w_giou * cost_giou


def compute_cost_matrix(logits_flat, out_bbox, tgt_ids, tgt_bbox,
                        cost_class=1.0, cost_bbox=1.0, cost_giou=1.0, tile_n=256):
    """Pallas cost-matrix kernel. logits_flat: (N,C), out_bbox: (N,4) cxcywh,
    tgt_ids: (M,) int, tgt_bbox: (M,4) cxcywh. Returns (N, M) f32."""
    N, C = logits_flat.shape
    M = int(tgt_ids.shape[0])

    C_pad = _round_up(C, LANE)
    M_pad = _round_up(max(M, 1), LANE)
    N_pad8 = _round_up(N, 8)
    TN = min(_round_up(int(tile_n), 8), N_pad8)
    N_pad = _round_up(N_pad8, TN)

    # ---- logits padded to (N_pad, C_pad); padded columns get a huge negative so exp->0 ----
    logits_p = jnp.full((N_pad, C_pad), -1e30, jnp.float32)
    logits_p = logits_p.at[:N, :C].set(logits_flat.astype(jnp.float32))

    # ---- per-row slab: [cx, cy, w, h, x0, y0, x1, y1]; pad rows are valid boxes ----
    pad_row = jnp.array([0.5, 0.5, 0.5, 0.5, 0.25, 0.25, 0.75, 0.75], jnp.float32)

    ob = out_bbox.astype(jnp.float32)
    o_xyxy = jnp.concatenate([ob[:, :2] - 0.5 * ob[:, 2:], ob[:, :2] + 0.5 * ob[:, 2:]], axis=-1)
    obox8 = jnp.concatenate([ob, o_xyxy], axis=-1)                      # (N, 8)
    obox8_p = jnp.broadcast_to(pad_row, (N_pad, 8)).at[:N].set(obox8)   # (N_pad, 8)

    tb = tgt_bbox.astype(jnp.float32)
    t_xyxy = jnp.concatenate([tb[:, :2] - 0.5 * tb[:, 2:], tb[:, :2] + 0.5 * tb[:, 2:]], axis=-1)
    tbox8 = jnp.concatenate([tb, t_xyxy], axis=-1)                      # (M, 8)
    tbox8_t = jnp.broadcast_to(pad_row, (M_pad, 8)).at[:M].set(tbox8).T  # (8, M_pad)

    # ---- one-hot (C_pad, M_pad), pre-scaled by -cost_class; padded ids = -1 -> zero cols ----
    ids_p = jnp.full((M_pad,), -1, jnp.int32).at[:M].set(tgt_ids.astype(jnp.int32))
    onehot = (jnp.arange(C_pad, dtype=jnp.int32)[:, None] == ids_p[None, :]
              ).astype(jnp.float32) * (-float(cost_class))

    kernel = functools.partial(_cost_kernel, w_bbox=float(cost_bbox), w_giou=float(cost_giou))
    out = pl.pallas_call(
        kernel,
        out_shape=jax.ShapeDtypeStruct((N_pad, M_pad), jnp.float32),
        grid=(N_pad // TN,),
        in_specs=[
            pl.BlockSpec((TN, C_pad), lambda i: (i, 0)),
            pl.BlockSpec((TN, 8), lambda i: (i, 0)),
            pl.BlockSpec((C_pad, M_pad), lambda i: (0, 0)),   # resident across grid steps
            pl.BlockSpec((8, M_pad), lambda i: (0, 0)),       # resident across grid steps
        ],
        out_specs=pl.BlockSpec((TN, M_pad), lambda i: (i, 0)),
        compiler_params=pltpu.CompilerParams(
            dimension_semantics=("parallel",),
            vmem_limit_bytes=32 * 1024 * 1024),
    )(logits_p, obox8_p, onehot, tbox8_t)

    return out[:N, :M]


def _lsa_bruteforce(cost):
    """Exact linear_sum_assignment for small rectangular (nq >= nt) matrices."""
    # TODO(synk): Hungarian assignment is a sequential combinatorial algorithm with no
    # Pallas equivalent; host brute force here (replace with scipy/JV solver at real sizes).
    nq, nt = cost.shape
    best_rows, best_cost = None, np.inf
    cols = np.arange(nt)
    for perm in itertools.permutations(range(nq), nt):
        c = cost[list(perm), cols].sum()
        if c < best_cost:
            best_cost, best_rows = c, np.array(perm)
    order = np.argsort(best_rows)
    return best_rows[order].astype(np.int64), cols[order].astype(np.int64)


def hungarian_matcher(outputs, targets, cost_class=1.0, cost_bbox=1.0, cost_giou=1.0):
    bs, num_queries = outputs["pred_logits"].shape[:2]
    logits_flat = outputs["pred_logits"].reshape(bs * num_queries, -1)
    out_bbox = outputs["pred_boxes"].reshape(bs * num_queries, 4)
    tgt_ids = jnp.concatenate([t["labels"] for t in targets])
    tgt_bbox = jnp.concatenate([t["boxes"] for t in targets])

    C = compute_cost_matrix(logits_flat, out_bbox, tgt_ids, tgt_bbox,
                            cost_class, cost_bbox, cost_giou)
    C = jax.block_until_ready(C)
    C_np = np.asarray(C).reshape(bs, num_queries, -1)

    sizes = [int(t["boxes"].shape[0]) for t in targets]
    splits = np.cumsum(sizes)[:-1]
    chunks = np.split(C_np, splits, axis=-1) if len(sizes) > 1 else [C_np]
    indices = [_lsa_bruteforce(chunks[i][i]) for i in range(bs)]
    return C, indices


def _reference_cost_matrix(logits_flat, out_bbox, tgt_ids, tgt_bbox,
                           cost_class, cost_bbox, cost_giou):
    logits = np.asarray(logits_flat, np.float64)
    ob = np.asarray(out_bbox, np.float64)
    tb = np.asarray(tgt_bbox, np.float64)
    ids = np.asarray(tgt_ids)
    e = np.exp(logits - logits.max(-1, keepdims=True))
    probs = e / e.sum(-1, keepdims=True)
    cc = -probs[:, ids]
    cb = np.abs(ob[:, None, :] - tb[None, :, :]).sum(-1)

    def to_xyxy(b):
        return np.stack([b[:, 0] - 0.5 * b[:, 2], b[:, 1] - 0.5 * b[:, 3],
                         b[:, 0] + 0.5 * b[:, 2], b[:, 1] + 0.5 * b[:, 3]], -1)

    b1, b2 = to_xyxy(ob), to_xyxy(tb)
    a1 = (b1[:, 2] - b1[:, 0]) * (b1[:, 3] - b1[:, 1])
    a2 = (b2[:, 2] - b2[:, 0]) * (b2[:, 3] - b2[:, 1])
    lt = np.maximum(b1[:, None, :2], b2[None, :, :2])
    rb = np.minimum(b1[:, None, 2:], b2[None, :, 2:])
    wh = np.clip(rb - lt, 0, None)
    inter = wh[:, :, 0] * wh[:, :, 1]
    union = a1[:, None] + a2[None, :] - inter
    iou = inter / union
    lt2 = np.minimum(b1[:, None, :2], b2[None, :, :2])
    rb2 = np.maximum(b1[:, None, 2:], b2[None, :, 2:])
    wh2 = np.clip(rb2 - lt2, 0, None)
    enc = wh2[:, :, 0] * wh2[:, :, 1]
    giou = iou - (enc - union) / enc
    return cost_bbox * cb + cost_class * cc + cost_giou * (-giou)


if __name__ == "__main__":
    key = jax.random.PRNGKey(0)
    bs, num_queries, num_classes = 2, 8, 16
    num_tgt_per_batch = [4, 4]

    k1, k2, k3, k4 = jax.random.split(key, 4)
    pred_logits = jax.random.normal(k1, (bs, num_queries, num_classes), jnp.float32)
    pb_c = jax.random.uniform(k2, (bs, num_queries, 2), minval=0.2, maxval=0.8)
    pb_wh = jax.random.uniform(k3, (bs, num_queries, 2), minval=0.05, maxval=0.3)
    pred_boxes = jnp.concatenate([pb_c, pb_wh], axis=-1).astype(jnp.float32)

    targets = []
    tkeys = jax.random.split(k4, bs)
    for b in range(bs):
        ka, kb, kc = jax.random.split(tkeys[b], 3)
        n = num_tgt_per_batch[b]
        labels = jax.random.randint(ka, (n,), 0, num_classes, jnp.int32)
        tb_c = jax.random.uniform(kb, (n, 2), minval=0.2, maxval=0.8)
        tb_wh = jax.random.uniform(kc, (n, 2), minval=0.05, maxval=0.3)
        boxes = jnp.concatenate([tb_c, tb_wh], axis=-1).astype(jnp.float32)
        targets.append({"labels": labels, "boxes": boxes})

    outputs = {"pred_logits": pred_logits, "pred_boxes": pred_boxes}

    C, indices = hungarian_matcher(outputs, targets,
                                   cost_class=1.0, cost_bbox=1.0, cost_giou=1.0)
    jax.block_until_ready(C)

    # verify cost matrix against float64 numpy reference
    tgt_ids = np.concatenate([np.asarray(t["labels"]) for t in targets])
    tgt_bbox = np.concatenate([np.asarray(t["boxes"]) for t in targets])
    ref = _reference_cost_matrix(
        np.asarray(pred_logits).reshape(bs * num_queries, num_classes),
        np.asarray(pred_boxes).reshape(bs * num_queries, 4),
        tgt_ids, tgt_bbox, 1.0, 1.0, 1.0)
    np.testing.assert_allclose(np.asarray(C), ref, rtol=1e-5, atol=1e-5)

    assert len(indices) == bs
    for (i_idx, j_idx), n in zip(indices, num_tgt_per_batch):
        assert i_idx.shape == (n,) and j_idx.shape == (n,)

    print("KERNEL_OK")
</pallas_src>

<mosaic_0001>
module attributes {stable_mosaic.version = 11 : i64} {
  func.func @_cost_kernel(%arg0: i32, %arg1: memref<16x128xf32, #tpu.memory_space<vmem>>, %arg2: memref<16x8xf32, #tpu.memory_space<vmem>>, %arg3: memref<128x128xf32, #tpu.memory_space<vmem>>, %arg4: memref<8x128xf32, #tpu.memory_space<vmem>>, %arg5: memref<16x128xf32, #tpu.memory_space<vmem>>) attributes {dimension_semantics = [#tpu.dimension_semantics<parallel>], iteration_bounds = array<i64: 1>, scalar_prefetch = 0 : i64, scratch_operands = 0 : i64, tpu.core_type = #tpu.core_type<tc>, window_params = [{transform_indices = @transform_0, window_bounds = array<i64: 16, 128>}, {transform_indices = @transform_1, window_bounds = array<i64: 16, 8>}, {pipeline_mode = #tpu.pipeline_mode<synchronous>, transform_indices = @transform_2, window_bounds = array<i64: 128, 128>}, {pipeline_mode = #tpu.pipeline_mode<synchronous>, transform_indices = @transform_3, window_bounds = array<i64: 8, 128>}, {transform_indices = @transform_4, window_bounds = array<i64: 16, 128>}]} {
    %c0 = arith.constant 0 : index
    %c0_0 = arith.constant 0 : index
    %0 = vector.load %arg1[%c0, %c0_0] : memref<16x128xf32, #tpu.memory_space<vmem>>, vector<16x128xf32>
    %c0_1 = arith.constant 0 : index
    %c0_2 = arith.constant 0 : index
    %1 = vector.load %arg2[%c0_1, %c0_2] : memref<16x8xf32, #tpu.memory_space<vmem>>, vector<16x8xf32>
    %c0_3 = arith.constant 0 : index
    %c0_4 = arith.constant 0 : index
    %2 = vector.load %arg3[%c0_3, %c0_4] : memref<128x128xf32, #tpu.memory_space<vmem>>, vector<128x128xf32>
    %c0_5 = arith.constant 0 : index
    %c0_6 = arith.constant 0 : index
    %3 = vector.load %arg4[%c0_5, %c0_6] : memref<8x128xf32, #tpu.memory_space<vmem>>, vector<8x128xf32>
    %cst = arith.constant dense<0xFF800000> : vector<16xf32>
    %4 = vector.multi_reduction <maximumf>, %0, %cst [1] : vector<16x128xf32> to vector<16xf32>
    %5 = vector.shape_cast %4 : vector<16xf32> to vector<16x1xf32>
    %6 = vector.broadcast %5 : vector<16x1xf32> to vector<16x128xf32>
    %7 = arith.subf %0, %6 : vector<16x128xf32>
    %8 = math.exp %7 : vector<16x128xf32>
    %cst_7 = arith.constant dense<0.000000e+00> : vector<16xf32>
    %9 = vector.multi_reduction <add>, %8, %cst_7 [1] : vector<16x128xf32> to vector<16xf32>
    %10 = vector.shape_cast %9 : vector<16xf32> to vector<16x1xf32>
    %11 = tpu.reciprocal %10 : vector<16x1xf32> -> vector<16x1xf32>
    %cst_8 = arith.constant dense<0.000000e+00> : vector<16x128xf32>
    %12 = tpu.matmul %8, %2, %cst_8 {dimension_numbers = #tpu.dot_dimension_numbers<[1], [0], [0], [1], [0, 0, 1, 1], [], []>} : vector<16x128xf32>, vector<128x128xf32>, vector<16x128xf32> -> vector<16x128xf32>
    %13 = vector.broadcast %11 : vector<16x1xf32> to vector<16x128xf32>
    %14 = arith.mulf %12, %13 : vector<16x128xf32>
    %15 = vector.extract_strided_slice %1 {offsets = [0, 0], sizes = [16, 1], strides = [1, 1]} : vector<16x8xf32> to vector<16x1xf32>
    %16 = vector.extract_strided_slice %3 {offsets = [0, 0], sizes = [1, 128], strides = [1, 1]} : vector<8x128xf32> to vector<1x128xf32>
    %17 = vector.broadcast %15 : vector<16x1xf32> to vector<16x128xf32>
    %18 = vector.broadcast %16 : vector<1x128xf32> to vector<16x128xf32>
    %19 = arith.subf %17, %18 : vector<16x128xf32>
    %20 = math.absf %19 : vector<16x128xf32>
    %21 = vector.extract_strided_slice %1 {offsets = [0, 1], sizes = [16, 1], strides = [1, 1]} : vector<16x8xf32> to vector<16x1xf32>
    %22 = vector.extract_strided_slice %3 {offsets = [1, 0], sizes = [1, 128], strides = [1, 1]} : vector<8x128xf32> to vector<1x128xf32>
    %23 = vector.broadcast %21 : vector<16x1xf32> to vector<16x128xf32>
    %24 = vector.broadcast %22 : vector<1x128xf32> to vector<16x128xf32>
    %25 = arith.subf %23, %24 : vector<16x128xf32>
    %26 = math.absf %25 : vector<16x128xf32>
    %27 = arith.addf %20, %26 : vector<16x128xf32>
    %28 = vector.extract_strided_slice %1 {offsets = [0, 2], sizes = [16, 1], strides = [1, 1]} : vector<16x8xf32> to vector<16x1xf32>
    %29 = vector.extract_strided_slice %3 {offsets = [2, 0], sizes = [1, 128], strides = [1, 1]} : vector<8x128xf32> to vector<1x128xf32>
    %30 = vector.broadcast %28 : vector<16x1xf32> to vector<16x128xf32>
    %31 = vector.broadcast %29 : vector<1x128xf32> to vector<16x128xf32>
    %32 = arith.subf %30, %31 : vector<16x128xf32>
    %33 = math.absf %32 : vector<16x128xf32>
    %34 = arith.addf %27, %33 : vector<16x128xf32>
    %35 = vector.extract_strided_slice %1 {offsets = [0, 3], sizes = [16, 1], strides = [1, 1]} : vector<16x8xf32> to vector<16x1xf32>
    %36 = vector.extract_strided_slice %3 {offsets = [3, 0], sizes = [1, 128], strides = [1, 1]} : vector<8x128xf32> to vector<1x128xf32>
    %37 = vector.broadcast %35 : vector<16x1xf32> to vector<16x128xf32>
    %38 = vector.broadcast %36 : vector<1x128xf32> to vector<16x128xf32>
    %39 = arith.subf %37, %38 : vector<16x128xf32>
    %40 = math.absf %39 : vector<16x128xf32>
    %41 = arith.addf %34, %40 : vector<16x128xf32>
    %42 = vector.extract_strided_slice %1 {offsets = [0, 4], sizes = [16, 1], strides = [1, 1]} : vector<16x8xf32> to vector<16x1xf32>
    %43 = vector.extract_strided_slice %1 {offsets = [0, 5], sizes = [16, 1], strides = [1, 1]} : vector<16x8xf32> to vector<16x1xf32>
    %44 = vector.extract_strided_slice %1 {offsets = [0, 6], sizes = [16, 1], strides = [1, 1]} : vector<16x8xf32> to vector<16x1xf32>
    %45 = vector.extract_strided_slice %1 {offsets = [0, 7], sizes = [16, 1], strides = [1, 1]} : vector<16x8xf32> to vector<16x1xf32>
    %46 = vector.extract_strided_slice %3 {offsets = [4, 0], sizes = [1, 128], strides = [1, 1]} : vector<8x128xf32> to vector<1x128xf32>
    %47 = vector.extract_strided_slice %3 {offsets = [5, 0], sizes = [1, 128], strides = [1, 1]} : vector<8x128xf32> to vector<1x128xf32>
    %48 = vector.extract_strided_slice %3 {offsets = [6, 0], sizes = [1, 128], strides = [1, 1]} : vector<8x128xf32> to vector<1x128xf32>
    %49 = vector.extract_strided_slice %3 {offsets = [7, 0], sizes = [1, 128], strides = [1, 1]} : vector<8x128xf32> to vector<1x128xf32>
    %50 = vector.extract_strided_slice %1 {offsets = [0, 2], sizes = [16, 1], strides = [1, 1]} : vector<16x8xf32> to vector<16x1xf32>
    %51 = vector.extract_strided_slice %1 {offsets = [0, 3], sizes = [16, 1], strides = [1, 1]} : vector<16x8xf32> to vector<16x1xf32>
    %52 = arith.mulf %50, %51 : vector<16x1xf32>
    %53 = vector.extract_strided_slice %3 {offsets = [2, 0], sizes = [1, 128], strides = [1, 1]} : vector<8x128xf32> to vector<1x128xf32>
    %54 = vector.extract_strided_slice %3 {offsets = [3, 0], sizes = [1, 128], strides = [1, 1]} : vector<8x128xf32> to vector<1x128xf32>
    %55 = arith.mulf %53, %54 : vector<1x128xf32>
    %56 = vector.broadcast %44 : vector<16x1xf32> to vector<16x128xf32>
    %57 = vector.broadcast %48 : vector<1x128xf32> to vector<16x128xf32>
    %58 = arith.minimumf %56, %57 : vector<16x128xf32>
    %59 = vector.broadcast %42 : vector<16x1xf32> to vector<16x128xf32>
    %60 = vector.broadcast %46 : vector<1x128xf32> to vector<16x128xf32>
    %61 = arith.maximumf %59, %60 : vector<16x128xf32>
    %62 = arith.subf %58, %61 : vector<16x128xf32>
    %cst_9 = arith.constant 0.000000e+00 : f32
    %63 = vector.broadcast %cst_9 : f32 to vector<16x128xf32>
    %64 = arith.maximumf %62, %63 : vector<16x128xf32>
    %65 = vector.broadcast %45 : vector<16x1xf32> to vector<16x128xf32>
    %66 = vector.broadcast %49 : vector<1x128xf32> to vector<16x128xf32>
    %67 = arith.minimumf %65, %66 : vector<16x128xf32>
    %68 = vector.broadcast %43 : vector<16x1xf32> to vector<16x128xf32>
    %69 = vector.broadcast %47 : vector<1x128xf32> to vector<16x128xf32>
    %70 = arith.maximumf %68, %69 : vector<16x128xf32>
    %71 = arith.subf %67, %70 : vector<16x128xf32>
    %cst_10 = arith.constant 0.000000e+00 : f32
    %72 = vector.broadcast %cst_10 : f32 to vector<16x128xf32>
    %73 = arith.maximumf %71, %72 : vector<16x128xf32>
    %74 = arith.mulf %64, %73 : vector<16x128xf32>
    %75 = vector.broadcast %52 : vector<16x1xf32> to vector<16x128xf32>
    %76 = vector.broadcast %55 : vector<1x128xf32> to vector<16x128xf32>
    %77 = arith.addf %75, %76 : vector<16x128xf32>
    %78 = arith.subf %77, %74 : vector<16x128xf32>
    %79 = vector.broadcast %44 : vector<16x1xf32> to vector<16x128xf32>
    %80 = vector.broadcast %48 : vector<1x128xf32> to vector<16x128xf32>
    %81 = arith.maximumf %79, %80 : vector<16x128xf32>
    %82 = vector.broadcast %42 : vector<16x1xf32> to vector<16x128xf32>
    %83 = vector.broadcast %46 : vector<1x128xf32> to vector<16x128xf32>
    %84 = arith.minimumf %82, %83 : vector<16x128xf32>
    %85 = arith.subf %81, %84 : vector<16x128xf32>
    %86 = vector.broadcast %45 : vector<16x1xf32> to vector<16x128xf32>
    %87 = vector.broadcast %49 : vector<1x128xf32> to vector<16x128xf32>
    %88 = arith.maximumf %86, %87 : vector<16x128xf32>
    %89 = vector.broadcast %43 : vector<16x1xf32> to vector<16x128xf32>
    %90 = vector.broadcast %47 : vector<1x128xf32> to vector<16x128xf32>
    %91 = arith.minimumf %89, %90 : vector<16x128xf32>
    %92 = arith.subf %88, %91 : vector<16x128xf32>
    %93 = arith.mulf %85, %92 : vector<16x128xf32>
    %94 = arith.subf %93, %78 : vector<16x128xf32>
    %95 = tpu.reciprocal %93 : vector<16x128xf32> -> vector<16x128xf32>
    %96 = arith.mulf %94, %95 : vector<16x128xf32>
    %97 = tpu.reciprocal %78 : vector<16x128xf32> -> vector<16x128xf32>
    %98 = arith.mulf %74, %97 : vector<16x128xf32>
    %99 = arith.subf %96, %98 : vector<16x128xf32>
    %cst_11 = arith.constant 1.000000e+00 : f32
    %100 = vector.broadcast %cst_11 : f32 to vector<16x128xf32>
    %101 = arith.mulf %100, %41 : vector<16x128xf32>
    %102 = arith.addf %14, %101 : vector<16x128xf32>
    %cst_12 = arith.constant 1.000000e+00 : f32
    %103 = vector.broadcast %cst_12 : f32 to vector<16x128xf32>
    %104 = arith.mulf %103, %99 : vector<16x128xf32>
    %105 = arith.addf %102, %104 : vector<16x128xf32>
    %c0_13 = arith.constant 0 : index
    %c0_14 = arith.constant 0 : index
    %106 = vector.load %arg5[%c0_13, %c0_14] : memref<16x128xf32, #tpu.memory_space<vmem>>, vector<16x128xf32>
    tpu.vector_store %arg5[%c0_13, %c0_14], %105 {strides = array<i32>} : memref<16x128xf32, #tpu.memory_space<vmem>>, vector<16x128xf32>,
    return
  }
  func.func @transform_0(%arg0: i32) -> (i32, i32) {
    %c0_i32 = arith.constant 0 : i32
    %c0_i32_0 = arith.constant 0 : i32
    return %arg0, %c0_i32 : i32, i32
  }
  func.func @transform_1(%arg0: i32) -> (i32, i32) {
    %c0_i32 = arith.constant 0 : i32
    %c0_i32_0 = arith.constant 0 : i32
    return %arg0, %c0_i32 : i32, i32
  }
  func.func @transform_2(%arg0: i32) -> (i32, i32) {
    %c0_i32 = arith.constant 0 : i32
    %c0_i32_0 = arith.constant 0 : i32
    %c0_i32_1 = arith.constant 0 : i32
    return %c0_i32, %c0_i32_0 : i32, i32
  }
  func.func @transform_3(%arg0: i32) -> (i32, i32) {
    %c0_i32 = arith.constant 0 : i32
    %c0_i32_0 = arith.constant 0 : i32
    %c0_i32_1 = arith.constant 0 : i32
    return %c0_i32, %c0_i32_0 : i32, i32
  }
  func.func @transform_4(%arg0: i32) -> (i32, i32) {
    %c0_i32 = arith.constant 0 : i32
    %c0_i32_0 = arith.constant 0 : i32
    return %arg0, %c0_i32 : i32, i32
  }
}

</mosaic_0001>

<llo_original>
// kernel: tpu_custom_call.1
$region0: #{tpu_custom_call.1}
  #allocation0 [shape = 'u32[]', space=smem, size = 0x4, offset = 0x4, fixed_abs, tag = 'smem constant byte address 0x4 - core index']
  #allocation1 [shape = 'u32[72,128]{1,0:T(1,128)}', space=vmem, size = 0x9000, scoped, tag = 'internal scratch']
  %s0 = inlined_call_operand.vmem [shape: f32[16,128], index: 0, kind: input, shape index: {}]
  %s1 = inlined_call_operand.vmem [shape: f32[16,8], index: 1, kind: input, shape index: {}]
  %s2 = inlined_call_operand.hbm [shape: f32[128,128], index: 2, kind: input, shape index: {}]
  %s3 = inlined_call_operand.vmem [shape: f32[8,128], index: 3, kind: input, shape index: {}]
  %s4 = inlined_call_operand.hbm [shape: f32[16,128], index: 4, kind: output, shape index: {}]
  %s5 = sld [smem:[#allocation0]]
  $region30: #{tpu_custom_call.1} parent=0
    _
  %s7 = ssub.s32 1, %s5
  %s8 = scalar_select 0, %s7, %s5
  $region1: #{tpu_custom_call.1} parent=0
    #allocation2 [shape = 'u8[65536]{0}', space=vmem, size = 0x10000, scoped, tag = 'input window, operand 2, single buffered']
    #allocation3 [shape = 's32[1]{0}', space=sflag, size = 0x4, scoped, tag = 'scoped memory for tpu_custom_call.1']
    #allocation4 [shape = 's32[1]{0}', space=sflag, size = 0x4, scoped, tag = 'scoped memory for tpu_custom_call.1']
    #allocation5 [shape = 'u8[8192]{0}', space=vmem, size = 0x2000, scoped, tag = 'output window, operand 0, single buffered']
    %9 = vsyncpa [#allocation3], 0
    %10 = vsyncpa [#allocation4], 0
    // Predicated region
    $region2: #{tpu_custom_call.1} parent=1 // pred_check
      _
    $region3: #{tpu_custom_call.1} parent=1 // pred_check_branch
      %12 = sbr.rel (0) target = $region5
    $region4: #{tpu_custom_call.1} parent=1 // pred_region
      _
    $region5: #{tpu_custom_call.1} parent=1 // pred_fallthru
      _
    // Predicated region
    $region6: #{tpu_custom_call.1} parent=1 // pred_check
      _
    $region7: #{tpu_custom_call.1} parent=1 // pred_check_branch
      %14 = sbr.rel (0) target = $region9
    $region8: #{tpu_custom_call.1} parent=1 // pred_region
      _
    $region9: #{tpu_custom_call.1} parent=1 // pred_fallthru
      _
    // Predicated region
    $region10: #{tpu_custom_call.1} parent=1 // pred_check
      _
    $region11: #{tpu_custom_call.1} parent=1 // pred_check_branch
      %16 = sbr.rel (0) target = $region13
    $region12: #{tpu_custom_call.1} parent=1 // pred_region
      %18 = vsyncadd [#allocation3], 0
      %s19 = sshll.u32 %s2, 4
      %s20 = int_to_ptr.hbm [resolvable:$true] %s19
      %s21 = sshll.u32 [#allocation2], 4
      %s22 = int_to_ptr.vmem [resolvable:$true] %s21
      %27 = dma.hbm_to_vmem [thread:$0]  %s20, 2048, %s22, [#allocation3], 128, 128, 8
    $region13: #{tpu_custom_call.1} parent=1 // pred_fallthru
      _
    // Predicated region
    $region14: #{tpu_custom_call.1} parent=1 // pred_check
      _
    $region15: #{tpu_custom_call.1} parent=1 // pred_check_branch
      %29 = sbr.rel (0) target = $region17
    $region16: #{tpu_custom_call.1} parent=1 // pred_region
      _
    $region17: #{tpu_custom_call.1} parent=1 // pred_fallthru
      _
    // Predicated region
    $region18: #{tpu_custom_call.1} parent=1 // pred_check
      _
    $region19: #{tpu_custom_call.1} parent=1 // pred_check_branch
      %31 = sbr.rel (0) target = $region21
    $region20: #{tpu_custom_call.1} parent=1 // pred_region
      %33 = dma.done [#allocation3], 2048
    $region21: #{tpu_custom_call.1} parent=1 // pred_fallthru
      _
    %v34 = vld [vmem:[%s0] sm:$0xff]
    %v35 = vld [vmem:[%s0 + $0x8] sm:$0xff]
    %v36 = vld [vmem:[%s1] sm:$0xff]
    %v37 = vld [vmem:[%s1 + $0x8] sm:$0xff]
    %v38 = vld [vmem:[#allocation2] sm:$0xff]
    %v39 = vld [vmem:[#allocation2 + $0x8] sm:$0xff]
    %v40 = vld [vmem:[#allocation2 + $0x10] sm:$0xff]
    %v41 = vld [vmem:[#allocation2 + $0x18] sm:$0xff]
    %v42 = vld [vmem:[#allocation2 + $0x20] sm:$0xff]
    %v43 = vld [vmem:[#allocation2 + $0x28] sm:$0xff]
    %v44 = vld [vmem:[#allocation2 + $0x30] sm:$0xff]
    %v45 = vld [vmem:[#allocation2 + $0x38] sm:$0xff]
    %v46 = vld [vmem:[#allocation2 + $0x40] sm:$0xff]
    %v47 = vld [vmem:[#allocation2 + $0x48] sm:$0xff]
    %v48 = vld [vmem:[#allocation2 + $0x50] sm:$0xff]
    %v49 = vld [vmem:[#allocation2 + $0x58] sm:$0xff]
    %v50 = vld [vmem:[#allocation2 + $0x60] sm:$0xff]
    %v51 = vld [vmem:[#allocation2 + $0x68] sm:$0xff]
    %v52 = vld [vmem:[#allocation2 + $0x70] sm:$0xff]
    %v53 = vld [vmem:[#allocation2 + $0x78] sm:$0xff]
    %v54 = vld [vmem:[%s3] sm:$0xff]
    %55 = vmax.xlane.f32.xlu0 %v34
    %v56 = vpop.xlane.xlu0 %55
    %57 = vmax.xlane.f32.xlu0 %v35
    %v58 = vpop.xlane.xlu0 %57
    %v59 = vsub.f32 %v34, %v56
    %v60 = vsub.f32 %v35, %v58
    %v61 = vmul.f32 %v59, 1.442695
    %v62 = vpow.pop %v61
    %v63 = vmul.f32 %v60, 1.442695
    %v64 = vpow.pop %v63
    %65 = vadd.xlane.f32.xlu0 %v62
    %v66 = vpop.xlane.xlu0 %65
    %67 = vadd.xlane.f32.xlu0 %v64
    %v68 = vpop.xlane.xlu0 %67
    %v69 = vrcp.pop %v66
    %v70 = vmul.f32 %v66, %v69
    %v71 = vsub.f32 1.0, %v70
    %v72 = vmul.f32 %v69, %v71
    %v73 = vadd.f32 %v69, %v72
    %vm74 = vweird.f32 %v66
    %vm75 = vweird.f32 %v69
    %vm76 = vmor %vm74, %vm75
    %v77 = vsel %vm76, %v69, %v73
    %v78 = vand.u32 2147483647, %v66
    %vm79 = vcmp.eq.f32.partialorder %v78, 8.507059e+37
    %v80 = vand.u32 %v66, 2147483648
    %v81 = vor.u32 1.1754944e-38, %v80
    %v82 = vsel %vm79, %v81, %v77
    %v83 = vrcp.pop %v68
    %v84 = vmul.f32 %v68, %v83
    %v85 = vsub.f32 1.0, %v84
    %v86 = vmul.f32 %v83, %v85
    %v87 = vadd.f32 %v83, %v86
    %vm88 = vweird.f32 %v68
    %vm89 = vweird.f32 %v83
    %vm90 = vmor %vm88, %vm89
    %v91 = vsel %vm90, %v83, %v87
    %v92 = vand.u32 2147483647, %v68
    %vm93 = vcmp.eq.f32.partialorder %v92, 8.507059e+37
    %v94 = vand.u32 %v68, 2147483648
    %v95 = vor.u32 1.1754944e-38, %v94
    %v96 = vsel %vm93, %v95, %v91
    %97 = vmatpush.msra.mxu0 %v53
    %98 = vmatpush.msra.mxu0 %v52
    %99 = vmatpush.msra.mxu0 %v51
    %100 = vmatpush.msra.mxu0 %v50
    %101 = vmatpush.msra.mxu0 %v49
    %102 = vmatpush.msra.mxu0 %v48
    %103 = vmatpush.msra.mxu0 %v47
    %104 = vmatpush.msra.mxu0 %v46
    %105 = vmatpush.msra.mxu0 %v45
    %106 = vmatpush.msra.mxu0 %v44
    %107 = vmatpush.msra.mxu0 %v43
    %108 = vmatpush.msra.mxu0 %v42
    %109 = vmatpush.msra.mxu0 %v41
    %110 = vmatpush.msra.mxu0 %v40
    %111 = vmatpush.msra.mxu0 %v39
    %112 = vmatpush.msra.mxu0 %v38
    %113 = vmatmul.f32.gmra.mxu0 %v62
    %v114 = vpop.f32.mrf.mxu0
    %v115 = vadd.f32 0.0, %v114
    %116 = vmatmul.f32.gmra.mxu0 %v64
    %v117 = vpop.f32.mrf.mxu0
    %v118 = vadd.f32 0.0, %v117
    %119 = vdwg.mxu0
    %v120 = vmul.f32 %v115, %v82
    %v121 = vmul.f32 %v118, %v96
    %123 = vset.pattern.permute.xlu0 0
    %124 = vperm.xlu0 %123, %v36
    %v125 = vpop.permute.xlu0 %124
    %128 = vset.pattern.permute.xlu0 0
    %129 = vperm.xlu0 %128, %v37
    %v130 = vpop.permute.xlu0 %129
    %v132 = vperm.slane %v54, 0
    %v133 = vsub.f32 %v125, %v132
    %v134 = vsub.f32 %v130, %v132
    %v135 = vand.u32 2147483647, %v133
    %v136 = vand.u32 2147483647, %v134
    %137 = vset.pattern.permute.xlu0 1
    %138 = vperm.xlu0 %137, %v36
    %v139 = vpop.permute.xlu0 %138
    %141 = vset.pattern.permute.xlu0 1
    %142 = vperm.xlu0 %141, %v37
    %v143 = vpop.permute.xlu0 %142
    %v145 = vperm.slane %v54, 1
    %v146 = vsub.f32 %v139, %v145
    %v147 = vsub.f32 %v143, %v145
    %v148 = vand.u32 2147483647, %v146
    %v149 = vand.u32 2147483647, %v147
    %v150 = vadd.f32 %v135, %v148
    %v151 = vadd.f32 %v136, %v149
    %152 = vset.pattern.permute.xlu0 2
    %153 = vperm.xlu0 %152, %v36
    %v154 = vpop.permute.xlu0 %153
    %156 = vset.pattern.permute.xlu0 2
    %157 = vperm.xlu0 %156, %v37
    %v158 = vpop.permute.xlu0 %157
    %v160 = vperm.slane %v54, 2
    %v161 = vsub.f32 %v154, %v160
    %v162 = vsub.f32 %v158, %v160
    %v163 = vand.u32 2147483647, %v161
    %v164 = vand.u32 2147483647, %v162
    %v165 = vadd.f32 %v150, %v163
    %v166 = vadd.f32 %v151, %v164
    %167 = vset.pattern.permute.xlu0 3
    %168 = vperm.xlu0 %167, %v36
    %v169 = vpop.permute.xlu0 %168
    %171 = vset.pattern.permute.xlu0 3
    %172 = vperm.xlu0 %171, %v37
    %v173 = vpop.permute.xlu0 %172
    %v175 = vperm.slane %v54, 3
    %v176 = vsub.f32 %v169, %v175
    %v177 = vsub.f32 %v173, %v175
    %v178 = vand.u32 2147483647, %v176
    %v179 = vand.u32 2147483647, %v177
    %v180 = vadd.f32 %v165, %v178
    %v181 = vadd.f32 %v166, %v179
    %182 = vrot.lane.b32.xlu0 %v36, 127
    %v183 = vpop.permute.xlu0 %182
    %184 = vrot.lane.b32.xlu0 %v37, 127
    %v185 = vpop.permute.xlu0 %184
    %v188 = vmul.f32 %v36, %v183
    %v189 = vmul.f32 %v37, %v185
    %v191 = vrot.slane %v54, 1
    %v193 = vmul.f32 %v54, %v191
    %194 = vset.pattern.permute.xlu0 6
    %195 = vperm.xlu0 %194, %v36
    %v196 = vpop.permute.xlu0 %195
    %198 = vset.pattern.permute.xlu0 6
    %199 = vperm.xlu0 %198, %v37
    %v200 = vpop.permute.xlu0 %199
    %v202 = vperm.slane %v54, 6
    %v203 = vmin.f32 %v196, %v202
    %v204 = vmin.f32 %v200, %v202
    %205 = vset.pattern.permute.xlu0 4
    %206 = vperm.xlu0 %205, %v36
    %v207 = vpop.permute.xlu0 %206
    %209 = vset.pattern.permute.xlu0 4
    %210 = vperm.xlu0 %209, %v37
    %v211 = vpop.permute.xlu0 %210
    %v213 = vperm.slane %v54, 4
    %v214 = vmax.f32 %v207, %v213
    %v215 = vmax.f32 %v211, %v213
    %v216 = vsub.f32 %v203, %v214
    %v217 = vsub.f32 %v204, %v215
    %v218 = vmax.f32 %v216, 0.0
    %v219 = vmax.f32 %v217, 0.0
    %220 = vset.pattern.permute.xlu0 7
    %221 = vperm.xlu0 %220, %v36
    %v222 = vpop.permute.xlu0 %221
    %224 = vset.pattern.permute.xlu0 7
    %225 = vperm.xlu0 %224, %v37
    %v226 = vpop.permute.xlu0 %225
    %v228 = vperm.slane %v54, 7
    %v229 = vmin.f32 %v222, %v228
    %v230 = vmin.f32 %v226, %v228
    %231 = vset.pattern.permute.xlu0 5
    %232 = vperm.xlu0 %231, %v36
    %v233 = vpop.permute.xlu0 %232
    %235 = vset.pattern.permute.xlu0 5
    %236 = vperm.xlu0 %235, %v37
    %v237 = vpop.permute.xlu0 %236
    %v239 = vperm.slane %v54, 5
    %v240 = vmax.f32 %v233, %v239
    %v241 = vmax.f32 %v237, %v239
    %v242 = vsub.f32 %v229, %v240
    %v243 = vsub.f32 %v230, %v241
    %v244 = vmax.f32 %v242, 0.0
    %v245 = vmax.f32 %v243, 0.0
    %v246 = vmul.f32 %v218, %v244
    %v247 = vmul.f32 %v219, %v245
    %249 = vset.pattern.permute.xlu0 2
    %250 = vperm.xlu0 %249, %v188
    %v251 = vpop.permute.xlu0 %250
    %254 = vset.pattern.permute.xlu0 2
    %255 = vperm.xlu0 %254, %v189
    %v256 = vpop.permute.xlu0 %255
    %v258 = vperm.slane %v193, 2
    %v259 = vadd.f32 %v251, %v258
    %v260 = vadd.f32 %v256, %v258
    %v261 = vsub.f32 %v259, %v246
    %v262 = vsub.f32 %v260, %v247
    %v263 = vmax.f32 %v196, %v202
    %v264 = vmax.f32 %v200, %v202
    %v265 = vmin.f32 %v207, %v213
    %v266 = vmin.f32 %v211, %v213
    %v267 = vsub.f32 %v263, %v265
    %v268 = vsub.f32 %v264, %v266
    %v269 = vmax.f32 %v222, %v228
    %v270 = vmax.f32 %v226, %v228
    %v271 = vmin.f32 %v233, %v239
    %v272 = vmin.f32 %v237, %v239
    %v273 = vsub.f32 %v269, %v271
    %v274 = vsub.f32 %v270, %v272
    %v275 = vmul.f32 %v267, %v273
    %v276 = vmul.f32 %v268, %v274
    %v277 = vsub.f32 %v275, %v261
    %v278 = vsub.f32 %v276, %v262
    %v279 = vrcp.pop %v275
    %v280 = vmul.f32 %v275, %v279
    %v281 = vsub.f32 1.0, %v280
    %v282 = vmul.f32 %v279, %v281
    %v283 = vadd.f32 %v279, %v282
    %vm284 = vweird.f32 %v275
    %vm285 = vweird.f32 %v279
    %vm286 = vmor %vm284, %vm285
    %v287 = vsel %vm286, %v279, %v283
    %v288 = vand.u32 2147483647, %v275
    %vm289 = vcmp.eq.f32.partialorder %v288, 8.507059e+37
    %v290 = vand.u32 %v275, 2147483648
    %v291 = vor.u32 1.1754944e-38, %v290
    %v292 = vsel %vm289, %v291, %v287
    %v293 = vrcp.pop %v276
    %v294 = vmul.f32 %v276, %v293
    %v295 = vsub.f32 1.0, %v294
    %v296 = vmul.f32 %v293, %v295
    %v297 = vadd.f32 %v293, %v296
    %vm298 = vweird.f32 %v276
    %vm299 = vweird.f32 %v293
    %vm300 = vmor %vm298, %vm299
    %v301 = vsel %vm300, %v293, %v297
    %v302 = vand.u32 2147483647, %v276
    %vm303 = vcmp.eq.f32.partialorder %v302, 8.507059e+37
    %v304 = vand.u32 %v276, 2147483648
    %v305 = vor.u32 1.1754944e-38, %v304
    %v306 = vsel %vm303, %v305, %v301
    %v307 = vmul.f32 %v277, %v292
    %v308 = vmul.f32 %v278, %v306
    %v309 = vrcp.pop %v261
    %v310 = vmul.f32 %v261, %v309
    %v311 = vsub.f32 1.0, %v310
    %v312 = vmul.f32 %v309, %v311
    %v313 = vadd.f32 %v309, %v312
    %vm314 = vweird.f32 %v261
    %vm315 = vweird.f32 %v309
    %vm316 = vmor %vm314, %vm315
    %v317 = vsel %vm316, %v309, %v313
    %v318 = vand.u32 2147483647, %v261
    %vm319 = vcmp.eq.f32.partialorder %v318, 8.507059e+37
    %v320 = vand.u32 %v261, 2147483648
    %v321 = vor.u32 1.1754944e-38, %v320
    %v322 = vsel %vm319, %v321, %v317
    %v323 = vrcp.pop %v262
    %v324 = vmul.f32 %v262, %v323
    %v325 = vsub.f32 1.0, %v324
    %v326 = vmul.f32 %v323, %v325
    %v327 = vadd.f32 %v323, %v326
    %vm328 = vweird.f32 %v262
    %vm329 = vweird.f32 %v323
    %vm330 = vmor %vm328, %vm329
    %v331 = vsel %vm330, %v323, %v327
    %v332 = vand.u32 2147483647, %v262
    %vm333 = vcmp.eq.f32.partialorder %v332, 8.507059e+37
    %v334 = vand.u32 %v262, 2147483648
    %v335 = vor.u32 1.1754944e-38, %v334
    %v336 = vsel %vm333, %v335, %v331
    %v337 = vmul.f32 %v246, %v322
    %v338 = vmul.f32 %v247, %v336
    %v339 = vsub.f32 %v307, %v337
    %v340 = vsub.f32 %v308, %v338
    %v341 = vadd.f32 %v120, %v180
    %v342 = vadd.f32 %v121, %v181
    %v343 = vadd.f32 %v341, %v339
    %v344 = vadd.f32 %v342, %v340
    %345 = vst [vmem:[#allocation5] sm:$0xff] %v343
    %346 = vst [vmem:[#allocation5 + $0x8] sm:$0xff] %v344
    // Predicated region
    $region22: #{tpu_custom_call.1} parent=1 // pred_check
      _
    $region23: #{tpu_custom_call.1} parent=1 // pred_check_branch
      %348 = sbr.rel (0) target = $region25
    $region24: #{tpu_custom_call.1} parent=1 // pred_region
      %350 = vsyncadd [#allocation4], 0
      %s351 = sshll.u32 [#allocation5], 4
      %s352 = int_to_ptr.vmem [resolvable:$true] %s351
      %s353 = sshll.u32 %s4, 4
      %s354 = int_to_ptr.hbm [resolvable:$true] %s353
      %359 = dma.vmem_to_hbm [thread:$0]  %s352, 256, %s354, [#allocation4], 128, 128, 8
    $region25: #{tpu_custom_call.1} parent=1 // pred_fallthru
      _
    // Predicated region
    $region26: #{tpu_custom_call.1} parent=1 // pred_check
      _
    $region27: #{tpu_custom_call.1} parent=1 // pred_check_branch
      %361 = sbr.rel (0) target = $region29
    $region28: #{tpu_custom_call.1} parent=1 // pred_region
      %363 = dma.done [#allocation4], 256
    $region29: #{tpu_custom_call.1} parent=1 // pred_fallthru
      _
    %364 = vsyncpa [#allocation3], 1
    %365 = vsyncpa [#allocation4], 1

</llo_original>
